<compile_context>
chip_gen: v7x
topology: tpu7x:2x2x1
jax: 0.10.0
libtpu: 0.0.40
codegen_flags: <defaults>
</compile_context>

<pallas_src>
import jax
import jax.numpy as jnp
from jax.experimental import pallas as pl
from jax.experimental.pallas import tpu as pltpu

_LANE = 128     # vreg lane width
_SUBLANE = 8    # f32 sublane count


def _round_up(x, m):
    return ((x + m - 1) // m) * m


def _vmem_capacity_bytes():
    try:
        return int(pltpu.get_tpu_info().vmem_capacity_bytes)
    except Exception:
        return 64 << 20   # conservative per-TC fallback (v7x)


def mlp_head_kernel(x_ref, w1_ref, b1_ref, w2_ref, b2_ref, o_ref, h_ref):
    # x: (tb, IN)  w1: (IN, Hp)  b1: (1, Hp)  w2: (Hp, tn)  b2: (1, tn)  o: (tb, tn)
    # h_ref: (tb, Hp) f32 scratch; persists across the inner output-column axis, so
    # the first matmul runs once per batch tile and is reused for every column tile.
    @pl.when(pl.program_id(1) == 0)
    def _():
        h = jnp.dot(x_ref[...], w1_ref[...], preferred_element_type=jnp.float32)
        h_ref[...] = jnp.maximum(h + b1_ref[...], 0.0)

    y = jnp.dot(h_ref[...].astype(w2_ref.dtype), w2_ref[...],
                preferred_element_type=jnp.float32)
    o_ref[...] = (y + b2_ref[...]).astype(o_ref.dtype)


def mlp_head(x, w1, b1, w2, b2, *, compute_dtype=None):
    """Eval-mode MLP head: relu(x @ w1 + b1) @ w2 + b2.

    x: (B, IN); w1: (IN, H); b1: (H,); w2: (H, OUT); b2: (OUT,) -> (B, OUT).
    Weights are stored pre-transposed (in_features, out_features).
    """
    B, IN = x.shape
    H = w1.shape[1]
    OUT = w2.shape[1]
    out_dtype = x.dtype

    if compute_dtype is not None:
        x = x.astype(compute_dtype)
        w1 = w1.astype(compute_dtype)
        w2 = w2.astype(compute_dtype)

    itemsize = jnp.dtype(x.dtype).itemsize

    # Lane-dense padding only when the dim already spans >= one full vreg lane width;
    # tiny dims stay unpadded (block == full dim is legal, avoids write amplification).
    Hp = H if H < _LANE else _round_up(H, _LANE)
    OUTp = OUT if OUT < _LANE else _round_up(OUT, _LANE)

    # ---- generation-aware VMEM budget --------------------------------------------
    vmem_limit = (4 * _vmem_capacity_bytes()) // 5      # ~20% headroom
    budget = (3 * vmem_limit) // 4                      # headroom for compiler scratch

    # ---- tile selection from the VMEM accounting ----------------------------------
    def _need(tb, tn, w2_single):
        w1_b = itemsize * (IN * Hp + Hp)                      # W1+b1 resident (Buffered(1))
        w2_b = (1 if w2_single else 2) * itemsize * (Hp * tn + tn)
        return (w1_b + w2_b
                + 2 * itemsize * tb * IN                      # x tile, double-buffered
                + 2 * itemsize * tb * tn                      # out tile, double-buffered
                + 4 * tb * Hp + itemsize * tb * Hp            # f32 h scratch + cast copy
                + 4 * tb * tn)                                # f32 y slab

    tb = min(_round_up(B, _SUBLANE), 512)
    tn = OUTp
    # Stream W2 by column tiles only once the full weight set no longer fits.
    while _need(tb, tn, tn == OUTp) > budget and tn % (2 * _LANE) == 0:
        tn //= 2
    while _need(tb, tn, tn == OUTp) > budget and tb > _SUBLANE:
        tb = max(_SUBLANE, _round_up(tb // 2, _SUBLANE))

    # v7x megacore: make sure the parallel batch axis has >= 2 steps when B allows.
    if B > _SUBLANE and _round_up(B, tb) // tb < 2:
        tb = _round_up(-(-B // 2), _SUBLANE)

    Bp = _round_up(B, tb)
    n_b = Bp // tb
    n_out = OUTp // tn
    w2_resident = (n_out == 1)

    # ---- zero-padding (inert: relu(0)=0, zero rows/cols of W2 contribute nothing) --
    x_p = x if Bp == B else jnp.pad(x, ((0, Bp - B), (0, 0)))
    w1_p = w1 if Hp == H else jnp.pad(w1, ((0, 0), (0, Hp - H)))
    b1_p = (b1 if Hp == H else jnp.pad(b1, (0, Hp - H))).reshape(1, Hp)
    w2_p = w2 if (Hp == H and OUTp == OUT) else jnp.pad(w2, ((0, Hp - H), (0, OUTp - OUT)))
    b2_p = (b2 if OUTp == OUT else jnp.pad(b2, (0, OUTp - OUT))).reshape(1, OUTp)

    w2_reads = 1 if w2_resident else n_b
    cost = pl.CostEstimate(
        flops=2 * Bp * (IN * Hp + Hp * OUTp),
        transcendentals=0,
        bytes_accessed=itemsize * (Bp * IN + IN * Hp + Hp
                                   + w2_reads * (Hp * OUTp + OUTp)
                                   + Bp * OUTp),
    )

    def _run(single_buffer_consts):
        def cspec(shape, imap, const):
            if const and single_buffer_consts:
                return pl.BlockSpec(shape, imap, pipeline_mode=pl.Buffered(1))
            return pl.BlockSpec(shape, imap)

        return pl.pallas_call(
            mlp_head_kernel,
            out_shape=jax.ShapeDtypeStruct((Bp, OUTp), out_dtype),
            grid_spec=pltpu.PrefetchScalarGridSpec(
                num_scalar_prefetch=0,
                grid=(n_b, n_out),
                in_specs=[
                    pl.BlockSpec((tb, IN), lambda i, j: (i, 0)),         # x batch tile
                    cspec((IN, Hp), lambda i, j: (0, 0), True),          # W1 (resident)
                    cspec((1, Hp), lambda i, j: (0, 0), True),           # b1 (resident)
                    cspec((Hp, tn), lambda i, j: (0, j), w2_resident),   # W2 tile
                    cspec((1, tn), lambda i, j: (0, j), w2_resident),    # b2 tile
                ],
                out_specs=pl.BlockSpec((tb, tn), lambda i, j: (i, j)),
                scratch_shapes=[pltpu.VMEM((tb, Hp), jnp.float32)],
            ),
            compiler_params=pltpu.CompilerParams(
                dimension_semantics=("parallel", "arbitrary"),
                vmem_limit_bytes=int(vmem_limit)),
            cost_estimate=cost,
        )(x_p, w1_p, b1_p, w2_p, b2_p)

    try:
        out_p = _run(True)
    except Exception:
        # pipeline_mode=pl.Buffered(1) unsupported on this jax/libtpu: fall back to
        # default double-buffering (perf-only difference, correctness unchanged).
        out_p = _run(False)

    if Bp != B or OUTp != OUT:
        out_p = out_p[:B, :OUT]
    return out_p


def mlp_head_ref(x, w1, b1, w2, b2):
    h = jnp.maximum(x @ w1 + b1, 0.0)
    return h @ w2 + b2


if __name__ == "__main__":
    # Shapes implied by MLP_head(hidden_size=32, out_size=16, input_size=32)
    B, IN, H, OUT = 16, 32, 32, 16

    key = jax.random.PRNGKey(0)
    kx, kw1, kb1, kw2, kb2 = jax.random.split(key, 5)

    x = jax.random.normal(kx, (B, IN), dtype=jnp.float32)

    # Deterministic parameter init (Kaiming-uniform-ish bounds like nn.Linear defaults).
    bound1 = 1.0 / (IN ** 0.5)
    w1 = jax.random.uniform(kw1, (IN, H), minval=-bound1, maxval=bound1, dtype=jnp.float32)
    b1 = jax.random.uniform(kb1, (H,), minval=-bound1, maxval=bound1, dtype=jnp.float32)
    bound2 = 1.0 / (H ** 0.5)
    w2 = jax.random.uniform(kw2, (H, OUT), minval=-bound2, maxval=bound2, dtype=jnp.float32)
    b2 = jax.random.uniform(kb2, (OUT,), minval=-bound2, maxval=bound2, dtype=jnp.float32)

    out = jax.block_until_ready(mlp_head(x, w1, b1, w2, b2))

    ref = mlp_head_ref(x, w1, b1, w2, b2)
    assert out.shape == (B, OUT)
    assert jnp.allclose(out, ref, atol=1e-5, rtol=1e-5), "mismatch vs reference"

    print("KERNEL_OK")
</pallas_src>

<mosaic_0001>
module attributes {stable_mosaic.version = 11 : i64} {
  func.func @mlp_head_kernel(%arg0: i32, %arg1: i32, %arg2: memref<8x32xf32, #tpu.memory_space<vmem>>, %arg3: memref<32x32xf32, #tpu.memory_space<vmem>>, %arg4: memref<1x32xf32, #tpu.memory_space<vmem>>, %arg5: memref<32x16xf32, #tpu.memory_space<vmem>>, %arg6: memref<1x16xf32, #tpu.memory_space<vmem>>, %arg7: memref<8x16xf32, #tpu.memory_space<vmem>>, %arg8: memref<8x32xf32, #tpu.memory_space<vmem>>) attributes {dimension_semantics = [#tpu.dimension_semantics<parallel>, #tpu.dimension_semantics<arbitrary>], iteration_bounds = array<i64: 2, 1>, scalar_prefetch = 0 : i64, scratch_operands = 1 : i64, tpu.core_type = #tpu.core_type<tc>, window_params = [{transform_indices = @transform_0, window_bounds = array<i64: 8, 32>}, {pipeline_mode = #tpu.pipeline_mode<synchronous>, transform_indices = @transform_1, window_bounds = array<i64: 32, 32>}, {pipeline_mode = #tpu.pipeline_mode<synchronous>, transform_indices = @transform_2, window_bounds = array<i64: 1, 32>}, {pipeline_mode = #tpu.pipeline_mode<synchronous>, transform_indices = @transform_3, window_bounds = array<i64: 32, 16>}, {pipeline_mode = #tpu.pipeline_mode<synchronous>, transform_indices = @transform_4, window_bounds = array<i64: 1, 16>}, {transform_indices = @transform_5, window_bounds = array<i64: 8, 16>}]} {
    %c0_i32 = arith.constant 0 : i32
    %0 = arith.cmpi eq, %arg1, %c0_i32 : i32
    %1 = arith.extui %0 : i1 to i32
    %c0_i32_0 = arith.constant 0 : i32
    %2 = arith.cmpi ne, %1, %c0_i32_0 : i32
    scf.if %2 {
      %c0_8 = arith.constant 0 : index
      %c0_9 = arith.constant 0 : index
      %10 = vector.load %arg2[%c0_8, %c0_9] : memref<8x32xf32, #tpu.memory_space<vmem>>, vector<8x32xf32>
      %c0_10 = arith.constant 0 : index
      %c0_11 = arith.constant 0 : index
      %11 = vector.load %arg3[%c0_10, %c0_11] : memref<32x32xf32, #tpu.memory_space<vmem>>, vector<32x32xf32>
      %cst_12 = arith.constant dense<0.000000e+00> : vector<8x32xf32>
      %12 = tpu.matmul %10, %11, %cst_12 {dimension_numbers = #tpu.dot_dimension_numbers<[1], [0], [0], [1], [0, 0, 1, 1], [], []>} : vector<8x32xf32>, vector<32x32xf32>, vector<8x32xf32> -> vector<8x32xf32>
      %c0_13 = arith.constant 0 : index
      %c0_14 = arith.constant 0 : index
      %13 = vector.load %arg4[%c0_13, %c0_14] : memref<1x32xf32, #tpu.memory_space<vmem>>, vector<1x32xf32>
      %14 = vector.broadcast %13 : vector<1x32xf32> to vector<8x32xf32>
      %15 = arith.addf %12, %14 : vector<8x32xf32>
      %cst_15 = arith.constant 0.000000e+00 : f32
      %16 = vector.broadcast %cst_15 : f32 to vector<8x32xf32>
      %17 = arith.maximumf %15, %16 : vector<8x32xf32>
      %c0_16 = arith.constant 0 : index
      %c0_17 = arith.constant 0 : index
      %18 = vector.load %arg8[%c0_16, %c0_17] : memref<8x32xf32, #tpu.memory_space<vmem>>, vector<8x32xf32>
      tpu.vector_store %arg8[%c0_16, %c0_17], %17 {strides = array<i32>} : memref<8x32xf32, #tpu.memory_space<vmem>>, vector<8x32xf32>,
    } else {
    }
    %c0 = arith.constant 0 : index
    %c0_1 = arith.constant 0 : index
    %3 = vector.load %arg8[%c0, %c0_1] : memref<8x32xf32, #tpu.memory_space<vmem>>, vector<8x32xf32>
    %c0_2 = arith.constant 0 : index
    %c0_3 = arith.constant 0 : index
    %4 = vector.load %arg5[%c0_2, %c0_3] : memref<32x16xf32, #tpu.memory_space<vmem>>, vector<32x16xf32>
    %cst = arith.constant dense<0.000000e+00> : vector<8x16xf32>
    %5 = tpu.matmul %3, %4, %cst {dimension_numbers = #tpu.dot_dimension_numbers<[1], [0], [0], [1], [0, 0, 1, 1], [], []>} : vector<8x32xf32>, vector<32x16xf32>, vector<8x16xf32> -> vector<8x16xf32>
    %c0_4 = arith.constant 0 : index
    %c0_5 = arith.constant 0 : index
    %6 = vector.load %arg6[%c0_4, %c0_5] : memref<1x16xf32, #tpu.memory_space<vmem>>, vector<1x16xf32>
    %7 = vector.broadcast %6 : vector<1x16xf32> to vector<8x16xf32>
    %8 = arith.addf %5, %7 : vector<8x16xf32>
    %c0_6 = arith.constant 0 : index
    %c0_7 = arith.constant 0 : index
    %9 = vector.load %arg7[%c0_6, %c0_7] : memref<8x16xf32, #tpu.memory_space<vmem>>, vector<8x16xf32>
    tpu.vector_store %arg7[%c0_6, %c0_7], %8 {strides = array<i32>} : memref<8x16xf32, #tpu.memory_space<vmem>>, vector<8x16xf32>,
    return
  }
  func.func @transform_0(%arg0: i32, %arg1: i32) -> (i32, i32) {
    %c0_i32 = arith.constant 0 : i32
    %c0_i32_0 = arith.constant 0 : i32
    return %arg0, %c0_i32 : i32, i32
  }
  func.func @transform_1(%arg0: i32, %arg1: i32) -> (i32, i32) {
    %c0_i32 = arith.constant 0 : i32
    %c0_i32_0 = arith.constant 0 : i32
    %c0_i32_1 = arith.constant 0 : i32
    return %c0_i32, %c0_i32_0 : i32, i32
  }
  func.func @transform_2(%arg0: i32, %arg1: i32) -> (i32, i32) {
    %c0_i32 = arith.constant 0 : i32
    %c0_i32_0 = arith.constant 0 : i32
    %c0_i32_1 = arith.constant 0 : i32
    return %c0_i32, %c0_i32_0 : i32, i32
  }
  func.func @transform_3(%arg0: i32, %arg1: i32) -> (i32, i32) {
    %c0_i32 = arith.constant 0 : i32
    %c0_i32_0 = arith.constant 0 : i32
    return %c0_i32, %arg1 : i32, i32
  }
  func.func @transform_4(%arg0: i32, %arg1: i32) -> (i32, i32) {
    %c0_i32 = arith.constant 0 : i32
    %c0_i32_0 = arith.constant 0 : i32
    return %c0_i32, %arg1 : i32, i32
  }
  func.func @transform_5(%arg0: i32, %arg1: i32) -> (i32, i32) {
    %c0_i32 = arith.constant 0 : i32
    return %arg0, %arg1 : i32, i32
  }
}

module attributes {stable_mosaic.version = 11 : i64} {
  func.func @mlp_head_kernel(%arg0: i32, %arg1: i32, %arg2: memref<8x32xf32, #tpu.memory_space<vmem>>, %arg3: memref<32x32xf32, #tpu.memory_space<vmem>>, %arg4: memref<1x32xf32, #tpu.memory_space<vmem>>, %arg5: memref<32x16xf32, #tpu.memory_space<vmem>>, %arg6: memref<1x16xf32, #tpu.memory_space<vmem>>, %arg7: memref<8x16xf32, #tpu.memory_space<vmem>>, %arg8: memref<8x32xf32, #tpu.memory_space<vmem>>) attributes {dimension_semantics = [#tpu.dimension_semantics<parallel>, #tpu.dimension_semantics<arbitrary>], iteration_bounds = array<i64: 2, 1>, scalar_prefetch = 0 : i64, scratch_operands = 1 : i64, tpu.core_type = #tpu.core_type<tc>, window_params = [{transform_indices = @transform_0, window_bounds = array<i64: 8, 32>}, {pipeline_mode = #tpu.pipeline_mode<synchronous>, transform_indices = @transform_1, window_bounds = array<i64: 32, 32>}, {pipeline_mode = #tpu.pipeline_mode<synchronous>, transform_indices = @transform_2, window_bounds = array<i64: 1, 32>}, {transform_indices = @transform_3, window_bounds = array<i64: 32, 16>}, {transform_indices = @transform_4, window_bounds = array<i64: 1, 16>}, {transform_indices = @transform_5, window_bounds = array<i64: 8, 16>}]} {
    %c0_i32 = arith.constant 0 : i32
    %0 = arith.cmpi eq, %arg1, %c0_i32 : i32
    %1 = arith.extui %0 : i1 to i32
    %c0_i32_0 = arith.constant 0 : i32
    %2 = arith.cmpi ne, %1, %c0_i32_0 : i32
    scf.if %2 {
      %c0_8 = arith.constant 0 : index
      %c0_9 = arith.constant 0 : index
      %10 = vector.load %arg2[%c0_8, %c0_9] : memref<8x32xf32, #tpu.memory_space<vmem>>, vector<8x32xf32>
      %c0_10 = arith.constant 0 : index
      %c0_11 = arith.constant 0 : index
      %11 = vector.load %arg3[%c0_10, %c0_11] : memref<32x32xf32, #tpu.memory_space<vmem>>, vector<32x32xf32>
      %cst_12 = arith.constant dense<0.000000e+00> : vector<8x32xf32>
      %12 = tpu.matmul %10, %11, %cst_12 {dimension_numbers = #tpu.dot_dimension_numbers<[1], [0], [0], [1], [0, 0, 1, 1], [], []>} : vector<8x32xf32>, vector<32x32xf32>, vector<8x32xf32> -> vector<8x32xf32>
      %c0_13 = arith.constant 0 : index
      %c0_14 = arith.constant 0 : index
      %13 = vector.load %arg4[%c0_13, %c0_14] : memref<1x32xf32, #tpu.memory_space<vmem>>, vector<1x32xf32>
      %14 = vector.broadcast %13 : vector<1x32xf32> to vector<8x32xf32>
      %15 = arith.addf %12, %14 : vector<8x32xf32>
      %cst_15 = arith.constant 0.000000e+00 : f32
      %16 = vector.broadcast %cst_15 : f32 to vector<8x32xf32>
      %17 = arith.maximumf %15, %16 : vector<8x32xf32>
      %c0_16 = arith.constant 0 : index
      %c0_17 = arith.constant 0 : index
      %18 = vector.load %arg8[%c0_16, %c0_17] : memref<8x32xf32, #tpu.memory_space<vmem>>, vector<8x32xf32>
      tpu.vector_store %arg8[%c0_16, %c0_17], %17 {strides = array<i32>} : memref<8x32xf32, #tpu.memory_space<vmem>>, vector<8x32xf32>,
    } else {
    }
    %c0 = arith.constant 0 : index
    %c0_1 = arith.constant 0 : index
    %3 = vector.load %arg8[%c0, %c0_1] : memref<8x32xf32, #tpu.memory_space<vmem>>, vector<8x32xf32>
    %c0_2 = arith.constant 0 : index
    %c0_3 = arith.constant 0 : index
    %4 = vector.load %arg5[%c0_2, %c0_3] : memref<32x16xf32, #tpu.memory_space<vmem>>, vector<32x16xf32>
    %cst = arith.constant dense<0.000000e+00> : vector<8x16xf32>
    %5 = tpu.matmul %3, %4, %cst {dimension_numbers = #tpu.dot_dimension_numbers<[1], [0], [0], [1], [0, 0, 1, 1], [], []>} : vector<8x32xf32>, vector<32x16xf32>, vector<8x16xf32> -> vector<8x16xf32>
    %c0_4 = arith.constant 0 : index
    %c0_5 = arith.constant 0 : index
    %6 = vector.load %arg6[%c0_4, %c0_5] : memref<1x16xf32, #tpu.memory_space<vmem>>, vector<1x16xf32>
    %7 = vector.broadcast %6 : vector<1x16xf32> to vector<8x16xf32>
    %8 = arith.addf %5, %7 : vector<8x16xf32>
    %c0_6 = arith.constant 0 : index
    %c0_7 = arith.constant 0 : index
    %9 = vector.load %arg7[%c0_6, %c0_7] : memref<8x16xf32, #tpu.memory_space<vmem>>, vector<8x16xf32>
    tpu.vector_store %arg7[%c0_6, %c0_7], %8 {strides = array<i32>} : memref<8x16xf32, #tpu.memory_space<vmem>>, vector<8x16xf32>,
    return
  }
  func.func @transform_0(%arg0: i32, %arg1: i32) -> (i32, i32) {
    %c0_i32 = arith.constant 0 : i32
    %c0_i32_0 = arith.constant 0 : i32
    return %arg0, %c0_i32 : i32, i32
  }
  func.func @transform_1(%arg0: i32, %arg1: i32) -> (i32, i32) {
    %c0_i32 = arith.constant 0 : i32
    %c0_i32_0 = arith.constant 0 : i32
    %c0_i32_1 = arith.constant 0 : i32
    return %c0_i32, %c0_i32_0 : i32, i32
  }
  func.func @transform_2(%arg0: i32, %arg1: i32) -> (i32, i32) {
    %c0_i32 = arith.constant 0 : i32
    %c0_i32_0 = arith.constant 0 : i32
    %c0_i32_1 = arith.constant 0 : i32
    return %c0_i32, %c0_i32_0 : i32, i32
  }
  func.func @transform_3(%arg0: i32, %arg1: i32) -> (i32, i32) {
    %c0_i32 = arith.constant 0 : i32
    %c0_i32_0 = arith.constant 0 : i32
    return %c0_i32, %arg1 : i32, i32
  }
  func.func @transform_4(%arg0: i32, %arg1: i32) -> (i32, i32) {
    %c0_i32 = arith.constant 0 : i32
    %c0_i32_0 = arith.constant 0 : i32
    return %c0_i32, %arg1 : i32, i32
  }
  func.func @transform_5(%arg0: i32, %arg1: i32) -> (i32, i32) {
    %c0_i32 = arith.constant 0 : i32
    return %arg0, %arg1 : i32, i32
  }
}

</mosaic_0001>

<llo_original>
// kernel: tpu_custom_call.1
$region0: #{tpu_custom_call.1}
  #allocation0 [shape = 'u32[]', space=smem, size = 0x4, offset = 0x4, fixed_abs, tag = 'smem constant byte address 0x4 - core index']
  #allocation1 [shape = 'u32[144,128]{1,0:T(1,128)}', space=vmem, size = 0x12000, scoped, tag = 'internal scratch']
  #allocation2 [shape = 'f32[8,32]{1,0:T(8,128)}', space=vmem, size = 0x1000, scoped, tag = 'scratch operand']
  %s0 = inlined_call_operand.vmem [shape: f32[16,32], index: 0, kind: input, shape index: {}]
  %s1 = inlined_call_operand.vmem [shape: f32[32,32], index: 1, kind: input, shape index: {}]
  %s2 = inlined_call_operand.vmem [shape: f32[1,32], index: 2, kind: input, shape index: {}]
  %s3 = inlined_call_operand.vmem [shape: f32[32,16], index: 3, kind: input, shape index: {}]
  %s4 = inlined_call_operand.vmem [shape: f32[1,16], index: 4, kind: input, shape index: {}]
  %s5 = inlined_call_operand.hbm [shape: f32[16,16], index: 5, kind: output, shape index: {}]
  %s6 = sld [smem:[#allocation0]]
  $region57: #{tpu_custom_call.1} parent=0
    _
  %s8 = ssub.s32 1, %s6
  %s9 = scalar_select 0, %s8, %s6
  $region1: #{tpu_custom_call.1} parent=0
    #allocation3 [shape = 'u8[8192]{0}', space=vmem, size = 0x2000, scoped, tag = 'output window, operand 0']
    #allocation4 [shape = 's32[2]{0}', space=sflag, size = 0x8, scoped, tag = 'scoped memory for tpu_custom_call.1']
    %10 = vsyncpa [#allocation4], 0
    %s11 = scalar_lea.sflag [#allocation4], 1
    %12 = vsyncpa %s11, 0
    loop: start=0, step=1, limit=4
    $region2: #{tpu_custom_call.1} parent=1 // loop_pre_header
      _
    $region3: #{tpu_custom_call.1} parent=1 // loop_header
      %s14 = sphi 0, %s18
      %p15 = scmp.ge.s32.totalorder %s14, 4
      %s21 = sphi 0, %s33
      %s22 = sphi 0, %s29
      %s23 = sphi 0, %s21
      %s24 = sphi 0, %s22
      %s25 = sphi 0, %s23
      %s26 = sphi 0, %s24
      %s36 = sphi 0, %s38
      %s39 = sphi 0, %s36
      %s40 = sphi 0, %s39
      %s56 = sphi 0, %s40
      %s60 = sphi 0, %s60
      %s62 = sphi 0, %s60
      %s63 = sphi 0, %s62
      %s77 = sphi 0, %s63
      %s81 = sphi 0, %s81
      %s83 = sphi 0, %s81
      %s84 = sphi 0, %s83
      %s98 = sphi 0, %s84
      %s104 = sphi 0, %s106
      %s107 = sphi 0, %s104
      %s108 = sphi 0, %s107
      %s124 = sphi 0, %s108
      %s130 = sphi 0, %s132
      %s133 = sphi 0, %s130
      %s134 = sphi 0, %s133
      %s150 = sphi 0, %s134
      %s158 = sphi 0, %s160
      %s161 = sphi 0, %s158
      %s162 = sphi 0, %s161
      %s178 = sphi 0, %s162
    $region4: #{tpu_custom_call.1} parent=1 // loop_header_branch
      %17 = sbr.rel (%p15) target = $region8
    $region5: #{tpu_custom_call.1} parent=1 // loop_body
      %s19 = ssub.s32 %s14, 1
      %s20 = ssub.s32 %s14, 2
      %s27 = sadd.s32 1, %s22
      %p28 = scmp.ge.s32.totalorder %s27, 1
      %s29 = scalar_select %p28, 0, %s27
      %s30 = sadd.s32 1, %s21
      %s31 = scalar_select %p28, %s30, %s21
      %p32 = scmp.ge.s32.totalorder %s31, 2
      %s33 = scalar_select %p32, 0, %s31
      %s34 = ssub.s32 %s21, %s33
      %p35 = scmp.eq.s32.totalorder %s34, 0
      %s37 = sadd.s32 %s36, 1
      %s38 = scalar_select %p35, %s36, %s37
      %p41 = pneg %p35
      %p42 = scmp.eq.s32.totalorder %s14, 1
      %p43 = por %p41, %p42
      %p44 = scmp.ne.s32.totalorder %s36, %s39
      %p45 = scmp.eq.s32.totalorder %s14, 0
      %p46 = por %p44, %p45
      %p47 = scmp.ne.s32.totalorder %s36, %s39
      %p48 = scmp.eq.s32.totalorder %s19, 1
      %p49 = por %p47, %p48
      %p50 = scmp.ne.s32.totalorder %s39, %s40
      %p51 = scmp.eq.s32.totalorder %s19, 0
      %p52 = por %p50, %p51
      %p53 = scmp.ne.s32.totalorder %s39, %s40
      %p54 = scmp.eq.s32.totalorder %s20, 1
      %p55 = por %p53, %p54
      %p57 = scmp.ne.s32.totalorder %s40, %s56
      %p58 = scmp.eq.s32.totalorder %s20, 0
      %p59 = por %p57, %p58
      %s61 = sadd.s32 %s60, 1
      %p64 = scmp.eq.s32.totalorder %s14, 1
      %p65 = scmp.ne.s32.totalorder %s60, %s62
      %p66 = scmp.eq.s32.totalorder %s14, 0
      %p67 = por %p65, %p66
      %p68 = scmp.ne.s32.totalorder %s60, %s62
      %p69 = scmp.eq.s32.totalorder %s19, 1
      %p70 = por %p68, %p69
      %p71 = scmp.ne.s32.totalorder %s62, %s63
      %p72 = scmp.eq.s32.totalorder %s19, 0
      %p73 = por %p71, %p72
      %p74 = scmp.ne.s32.totalorder %s62, %s63
      %p75 = scmp.eq.s32.totalorder %s20, 1
      %p76 = por %p74, %p75
      %p78 = scmp.ne.s32.totalorder %s63, %s77
      %p79 = scmp.eq.s32.totalorder %s20, 0
      %p80 = por %p78, %p79
      %s82 = sadd.s32 %s81, 1
      %p85 = scmp.eq.s32.totalorder %s14, 1
      %p86 = scmp.ne.s32.totalorder %s81, %s83
      %p87 = scmp.eq.s32.totalorder %s14, 0
      %p88 = por %p86, %p87
      %p89 = scmp.ne.s32.totalorder %s81, %s83
      %p90 = scmp.eq.s32.totalorder %s19, 1
      %p91 = por %p89, %p90
      %p92 = scmp.ne.s32.totalorder %s83, %s84
      %p93 = scmp.eq.s32.totalorder %s19, 0
      %p94 = por %p92, %p93
      %p95 = scmp.ne.s32.totalorder %s83, %s84
      %p96 = scmp.eq.s32.totalorder %s20, 1
      %p97 = por %p95, %p96
      %p99 = scmp.ne.s32.totalorder %s84, %s98
      %p100 = scmp.eq.s32.totalorder %s20, 0
      %p101 = por %p99, %p100
      %s102 = ssub.s32 %s22, %s29
      %p103 = scmp.eq.s32.totalorder %s102, 0
      %s105 = sadd.s32 %s104, 1
      %s106 = scalar_select %p103, %s104, %s105
      %p109 = pneg %p103
      %p110 = scmp.eq.s32.totalorder %s14, 1
      %p111 = por %p109, %p110
      %p112 = scmp.ne.s32.totalorder %s104, %s107
      %p113 = scmp.eq.s32.totalorder %s14, 0
      %p114 = por %p112, %p113
      %p115 = scmp.ne.s32.totalorder %s104, %s107
      %p116 = scmp.eq.s32.totalorder %s19, 1
      %p117 = por %p115, %p116
      %p118 = scmp.ne.s32.totalorder %s107, %s108
      %p119 = scmp.eq.s32.totalorder %s19, 0
      %p120 = por %p118, %p119
      %p121 = scmp.ne.s32.totalorder %s107, %s108
      %p122 = scmp.eq.s32.totalorder %s20, 1
      %p123 = por %p121, %p122
      %p125 = scmp.ne.s32.totalorder %s108, %s124
      %p126 = scmp.eq.s32.totalorder %s20, 0
      %p127 = por %p125, %p126
      %s128 = ssub.s32 %s22, %s29
      %p129 = scmp.eq.s32.totalorder %s128, 0
      %s131 = sadd.s32 %s130, 1
      %s132 = scalar_select %p129, %s130, %s131
      %p135 = pneg %p129
      %p136 = scmp.eq.s32.totalorder %s14, 1
      %p137 = por %p135, %p136
      %p138 = scmp.ne.s32.totalorder %s130, %s133
      %p139 = scmp.eq.s32.totalorder %s14, 0
      %p140 = por %p138, %p139
      %p141 = scmp.ne.s32.totalorder %s130, %s133
      %p142 = scmp.eq.s32.totalorder %s19, 1
      %p143 = por %p141, %p142
      %p144 = scmp.ne.s32.totalorder %s133, %s134
      %p145 = scmp.eq.s32.totalorder %s19, 0
      %p146 = por %p144, %p145
      %p147 = scmp.ne.s32.totalorder %s133, %s134
      %p148 = scmp.eq.s32.totalorder %s20, 1
      %p149 = por %p147, %p148
      %p151 = scmp.ne.s32.totalorder %s134, %s150
      %p152 = scmp.eq.s32.totalorder %s20, 0
      %p153 = por %p151, %p152
      %s154 = ssub.s32 %s21, %s33
      %s155 = ssub.s32 %s22, %s29
      %s156 = sor.u32 %s154, %s155
      %p157 = scmp.eq.s32.totalorder %s156, 0
      %s159 = sadd.s32 %s158, 1
      %s160 = scalar_select %p157, %s158, %s159
      %p163 = pneg %p157
      %p164 = scmp.eq.s32.totalorder %s14, 1
      %p165 = por %p163, %p164
      %p166 = scmp.ne.s32.totalorder %s158, %s161
      %p167 = scmp.eq.s32.totalorder %s14, 0
      %p168 = por %p166, %p167
      %p169 = scmp.ne.s32.totalorder %s158, %s161
      %p170 = scmp.eq.s32.totalorder %s19, 1
      %p171 = por %p169, %p170
      %p172 = scmp.ne.s32.totalorder %s161, %s162
      %p173 = scmp.eq.s32.totalorder %s19, 0
      %p174 = por %p172, %p173
      %p175 = scmp.ne.s32.totalorder %s161, %s162
      %p176 = scmp.eq.s32.totalorder %s20, 1
      %p177 = por %p175, %p176
      %p179 = scmp.ne.s32.totalorder %s162, %s178
      %p180 = scmp.eq.s32.totalorder %s20, 0
      %p181 = por %p179, %p180
      %p182 = scmp.le.s32.totalorder 1, %s14
      %p183 = scmp.lt.s32.totalorder %s14, 3
      %p184 = pnand %p182, %p183
      %p185 = pneg %p184
      // Predicated region
      $region9: #{tpu_custom_call.1} parent=5 // pred_check
        _
      $region10: #{tpu_custom_call.1} parent=5 // pred_check_branch
        %187 = sbr.rel (%p184) target = $region12
      $region11: #{tpu_custom_call.1} parent=5 // pred_region
        %s188 = ssub.s32 %s14, 1
        // Predicated region
        $region13: #{tpu_custom_call.1} parent=11 // pred_check
          %p189 = pneg %p73
        $region14: #{tpu_custom_call.1} parent=11 // pred_check_branch
          %191 = sbr.rel (%p189) target = $region16
        $region15: #{tpu_custom_call.1} parent=11 // pred_region
          _
        $region16: #{tpu_custom_call.1} parent=11 // pred_fallthru
          _
        // Predicated region
        $region17: #{tpu_custom_call.1} parent=11 // pred_check
          %p192 = pneg %p94
        $region18: #{tpu_custom_call.1} parent=11 // pred_check_branch
          %194 = sbr.rel (%p192) target = $region20
        $region19: #{tpu_custom_call.1} parent=11 // pred_region
          _
        $region20: #{tpu_custom_call.1} parent=11 // pred_fallthru
          _
        // Predicated region
        $region21: #{tpu_custom_call.1} parent=11 // pred_check
          %p195 = pneg %p120
        $region22: #{tpu_custom_call.1} parent=11 // pred_check_branch
          %197 = sbr.rel (%p195) target = $region24
        $region23: #{tpu_custom_call.1} parent=11 // pred_region
          %p198 = scmp.lt.s32.totalorder %s24, 0
          %s199 = scalar_select %p198, %s24, 0
          %s200 = smul.addr %s199, 8
          %s201 = scalar_lea.vmem %s3, %s200
        $region24: #{tpu_custom_call.1} parent=11 // pred_fallthru
          _
        // Predicated region
        $region25: #{tpu_custom_call.1} parent=11 // pred_check
          %p202 = pneg %p146
        $region26: #{tpu_custom_call.1} parent=11 // pred_check_branch
          %204 = sbr.rel (%p202) target = $region28
        $region27: #{tpu_custom_call.1} parent=11 // pred_region
          %p205 = scmp.lt.s32.totalorder %s24, 0
          %s206 = scalar_select %p205, %s24, 0
          %s207 = scalar_lea.vmem %s4, %s206
        $region28: #{tpu_custom_call.1} parent=11 // pred_fallthru
          _
      $region12: #{tpu_custom_call.1} parent=5 // pred_fallthru
        _
      %p208 = scmp.lt.s32.totalorder %s14, 2
      // Predicated region
      $region29: #{tpu_custom_call.1} parent=5 // pred_check
        %p209 = pneg %p208
      $region30: #{tpu_custom_call.1} parent=5 // pred_check_branch
        %211 = sbr.rel (%p209) target = $region32
      $region31: #{tpu_custom_call.1} parent=5 // pred_region
        // Predicated region
        $region33: #{tpu_custom_call.1} parent=31 // pred_check
          %p212 = pneg %p46
        $region34: #{tpu_custom_call.1} parent=31 // pred_check_branch
          %214 = sbr.rel (%p212) target = $region36
        $region35: #{tpu_custom_call.1} parent=31 // pred_region
          %p215 = scmp.lt.s32.totalorder %s21, 1
          %s216 = scalar_select %p215, %s21, 1
          %s217 = smul.addr %s216, 8
          %s218 = scalar_lea.vmem %s0, %s217
        $region36: #{tpu_custom_call.1} parent=31 // pred_fallthru
          _
      $region32: #{tpu_custom_call.1} parent=5 // pred_fallthru
        _
      %p219 = scmp.le.s32.totalorder 1, %s14
      %p220 = scmp.lt.s32.totalorder %s14, 3
      %p221 = pnand %p219, %p220
      %p222 = pneg %p221
      // Predicated region
      $region37: #{tpu_custom_call.1} parent=5 // pred_check
        _
      $region38: #{tpu_custom_call.1} parent=5 // pred_check_branch
        %224 = sbr.rel (%p221) target = $region40
      $region39: #{tpu_custom_call.1} parent=5 // pred_region
        %s225 = ssub.s32 %s14, 1
        %p226 = scmp.lt.s32.totalorder %s23, 1
        %s227 = scalar_select %p226, %s23, 1
        %s228 = smul.addr %s227, 8
        %s229 = scalar_lea.vmem %s0, %s228
        %p230 = pneg %p52
        %p231 = pneg %p49
        %p232 = pneg %p73
        %p233 = pneg %p70
        %p234 = pneg %p94
        %p235 = pneg %p91
        %p236 = scmp.lt.s32.totalorder %s24, 0
        %s237 = scalar_select %p236, %s24, 0
        %s238 = smul.addr %s237, 8
        %s239 = scalar_lea.vmem %s3, %s238
        %p240 = pneg %p120
        %p241 = pneg %p117
        %p242 = scmp.lt.s32.totalorder %s24, 0
        %s243 = scalar_select %p242, %s24, 0
        %s244 = scalar_lea.vmem %s4, %s243
        %p245 = pneg %p146
        %p246 = pneg %p143
        %p247 = pneg %p174
        %p248 = pneg %p171
        %s249 = sand.u32 %s161, 1
        %s250 = scalar_lea.sflag [#allocation4], %s249
        %s251 = sand.u32 %s161, 1
        %s252 = smul.addr %s251, 8
        %s253 = scalar_lea.vmem [#allocation3], %s252
        %p254 = scmp.lt.s32.totalorder %s23, 1
        %s255 = scalar_select %p254, %s23, 1
        %s256 = smul.addr %s255, 8
        %s257 = scalar_lea.vmem %s0, %s256
        %p258 = scmp.lt.s32.totalorder %s24, 0
        %s259 = scalar_select %p258, %s24, 0
        %s260 = smul.addr %s259, 8
        %s261 = scalar_lea.vmem %s3, %s260
        %p262 = scmp.lt.s32.totalorder %s24, 0
        %s263 = scalar_select %p262, %s24, 0
        %s264 = scalar_lea.vmem %s4, %s263
        %p265 = scmp.eq.s32.totalorder %s24, 0
        // Predicated region
        $region41: #{tpu_custom_call.1} parent=39 // pred_check
          %p266 = pneg %p265
        $region42: #{tpu_custom_call.1} parent=39 // pred_check_branch
          %268 = sbr.rel (%p266) target = $region44
        $region43: #{tpu_custom_call.1} parent=39 // pred_region
          %v269 = vld [vmem:[%s257] sm:$0xff]
          %v270 = vld [vmem:[%s1] sm:$0xff]
          %v271 = vld [vmem:[%s1 + $0x8] sm:$0xff]
          %v272 = vld [vmem:[%s1 + $0x10] sm:$0xff]
          %v273 = vld [vmem:[%s1 + $0x18] sm:$0xff]
          %v274 = vld [vmem:[%s2] sm:$0x1]
          %v276 = vlaneseq
          %v277 = vshrl.u32 %v276, 7
          %v278 = vsub.s32 0, %v277
          %v279 = vrot.slane %v274, %v278
          %vm281 = vcmask 261120
          %v283 = vsel %vm281, %v269, 0
          %285 = vmatprep.subr.mxu0 0.0
          %286 = vmatpush1.msra.mxu0 %v270
          %287 = vmatprep.subr.mxu0 0.0
          %288 = vmatpush1.msra.mxu0 %v271
          %289 = vmatprep.subr.mxu0 0.0
          %290 = vmatpush1.msra.mxu0 %v272
          %291 = vmatprep.subr.mxu0 0.0
          %292 = vmatpush1.msra.mxu0 %v273
          %293 = vmatprep.subr.mxu0 0.0
          %294 = vmatpush1.msra.mxu0 0.0
          %295 = vmatprep.subr.mxu0 0.0
          %296 = vmatpush1.msra.mxu0 0.0
          %297 = vmatprep.subr.mxu0 0.0
          %298 = vmatpush1.msra.mxu0 0.0
          %299 = vmatprep.subr.mxu0 0.0
          %300 = vmatpush1.msra.mxu0 0.0
          %301 = vmatprep.subr.mxu0 0.0
          %302 = vmatpush1.msra.mxu0 0.0
          %303 = vmatprep.subr.mxu0 0.0
          %304 = vmatpush1.msra.mxu0 0.0
          %305 = vmatprep.subr.mxu0 0.0
          %306 = vmatpush1.msra.mxu0 0.0
          %307 = vmatprep.subr.mxu0 0.0
          %308 = vmatpush1.msra.mxu0 0.0
          %309 = vmatprep.subr.mxu0 0.0
          %310 = vmatpush1.msra.mxu0 0.0
          %311 = vmatprep.subr.mxu0 0.0
          %312 = vmatpush1.msra.mxu0 0.0
          %313 = vmatprep.subr.mxu0 0.0
          %314 = vmatpush1.msra.mxu0 0.0
          %315 = vmatprep.subr.mxu0 0.0
          %316 = vmatpush1.msra.mxu0 0.0
          %317 = vmatprep.subr.mxu0 0.0
          %318 = vmatpush1.msra.mxu0 0.0
          %319 = vmatprep.subr.mxu0 0.0
          %320 = vmatpush1.msra.mxu0 0.0
          %321 = vmatprep.subr.mxu0 0.0
          %322 = vmatpush1.msra.mxu0 0.0
          %323 = vmatprep.subr.mxu0 0.0
          %324 = vmatpush1.msra.mxu0 0.0
          %325 = vmatprep.subr.mxu0 0.0
          %326 = vmatpush1.msra.mxu0 0.0
          %327 = vmatprep.subr.mxu0 0.0
          %328 = vmatpush1.msra.mxu0 0.0
          %329 = vmatprep.subr.mxu0 0.0
          %330 = vmatpush1.msra.mxu0 0.0
          %331 = vmatprep.subr.mxu0 0.0
          %332 = vmatpush1.msra.mxu0 0.0
          %333 = vmatprep.subr.mxu0 0.0
          %334 = vmatpush1.msra.mxu0 0.0
          %335 = vmatprep.subr.mxu0 0.0
          %336 = vmatpush1.msra.mxu0 0.0
          %337 = vmatprep.subr.mxu0 0.0
          %338 = vmatpush1.msra.mxu0 0.0
          %339 = vmatprep.subr.mxu0 0.0
          %340 = vmatpush1.msra.mxu0 0.0
          %341 = vmatprep.subr.mxu0 0.0
          %342 = vmatpush1.msra.mxu0 0.0
          %343 = vmatprep.subr.mxu0 0.0
          %344 = vmatpush1.msra.mxu0 0.0
          %345 = vmatprep.subr.mxu0 0.0
          %346 = vmatpush1.msra.mxu0 0.0
          %347 = vmatprep.subr.mxu0 0.0
          %348 = vmatpush1.msra.mxu0 0.0
          %349 = vmatprep.mubr.f32.mxu0 0.0
          %350 = vmatmul.mubr.f32.gmra.mrb[0].mxu0 %v283
          %v351 = vpop.f32.mrb[0].mxu0
          %v352 = vadd.f32 %v279, %v351
          %v353 = vpop.f32.mrb[0].mxu0
          %354 = vdwg.mxu0
          %v355 = vmax.f32 %v352, 0.0
          %356 = vst.msk [vmem:[#allocation2] sm:$0xff] %vm281, %v355
        $region44: #{tpu_custom_call.1} parent=39 // pred_fallthru
          _
        %v357 = vld [vmem:[#allocation2] sm:$0xff]
        %v358 = vld [vmem:[%s261] sm:$0xff]
        %v359 = vld [vmem:[%s261 + $0x8] sm:$0xff]
        %v360 = vld [vmem:[%s261 + $0x10] sm:$0xff]
        %v361 = vld [vmem:[%s261 + $0x18] sm:$0xff]
        %v362 = vld [vmem:[%s264] sm:$0x1]
        %v364 = vlaneseq
        %v365 = vshrl.u32 %v364, 7
        %v366 = vsub.s32 0, %v365
        %v367 = vrot.slane %v362, %v366
        %vm369 = vcmask 261120
        %v371 = vsel %vm369, %v357, 0
        %373 = vmatprep.subr.mxu0 0.0
        %374 = vmatpush1.msra.mxu0 %v358
        %375 = vmatprep.subr.mxu0 0.0
        %376 = vmatpush1.msra.mxu0 %v359
        %377 = vmatprep.subr.mxu0 0.0
        %378 = vmatpush1.msra.mxu0 %v360
        %379 = vmatprep.subr.mxu0 0.0
        %380 = vmatpush1.msra.mxu0 %v361
        %381 = vmatprep.subr.mxu0 0.0
        %382 = vmatpush1.msra.mxu0 0.0
        %383 = vmatprep.subr.mxu0 0.0
        %384 = vmatpush1.msra.mxu0 0.0
        %385 = vmatprep.subr.mxu0 0.0
        %386 = vmatpush1.msra.mxu0 0.0
        %387 = vmatprep.subr.mxu0 0.0
        %388 = vmatpush1.msra.mxu0 0.0
        %389 = vmatprep.subr.mxu0 0.0
        %390 = vmatpush1.msra.mxu0 0.0
        %391 = vmatprep.subr.mxu0 0.0
        %392 = vmatpush1.msra.mxu0 0.0
        %393 = vmatprep.subr.mxu0 0.0
        %394 = vmatpush1.msra.mxu0 0.0
        %395 = vmatprep.subr.mxu0 0.0
        %396 = vmatpush1.msra.mxu0 0.0
        %397 = vmatprep.subr.mxu0 0.0
        %398 = vmatpush1.msra.mxu0 0.0
        %399 = vmatprep.subr.mxu0 0.0
        %400 = vmatpush1.msra.mxu0 0.0
        %401 = vmatprep.subr.mxu0 0.0
        %402 = vmatpush1.msra.mxu0 0.0
        %403 = vmatprep.subr.mxu0 0.0
        %404 = vmatpush1.msra.mxu0 0.0
        %405 = vmatprep.subr.mxu0 0.0
        %406 = vmatpush1.msra.mxu0 0.0
        %407 = vmatprep.subr.mxu0 0.0
        %408 = vmatpush1.msra.mxu0 0.0
        %409 = vmatprep.subr.mxu0 0.0
        %410 = vmatpush1.msra.mxu0 0.0
        %411 = vmatprep.subr.mxu0 0.0
        %412 = vmatpush1.msra.mxu0 0.0
        %413 = vmatprep.subr.mxu0 0.0
        %414 = vmatpush1.msra.mxu0 0.0
        %415 = vmatprep.subr.mxu0 0.0
        %416 = vmatpush1.msra.mxu0 0.0
        %417 = vmatprep.subr.mxu0 0.0
        %418 = vmatpush1.msra.mxu0 0.0
        %419 = vmatprep.subr.mxu0 0.0
        %420 = vmatpush1.msra.mxu0 0.0
        %421 = vmatprep.subr.mxu0 0.0
        %422 = vmatpush1.msra.mxu0 0.0
        %423 = vmatprep.subr.mxu0 0.0
        %424 = vmatpush1.msra.mxu0 0.0
        %425 = vmatprep.subr.mxu0 0.0
        %426 = vmatpush1.msra.mxu0 0.0
        %427 = vmatprep.subr.mxu0 0.0
        %428 = vmatpush1.msra.mxu0 0.0
        %429 = vmatprep.subr.mxu0 0.0
        %430 = vmatpush1.msra.mxu0 0.0
        %431 = vmatprep.subr.mxu0 0.0
        %432 = vmatpush1.msra.mxu0 0.0
        %433 = vmatprep.subr.mxu0 0.0
        %434 = vmatpush1.msra.mxu0 0.0
        %435 = vmatprep.subr.mxu0 0.0
        %436 = vmatpush1.msra.mxu0 0.0
        %437 = vmatprep.mubr.f32.mxu0 0.0
        %438 = vmatmul.mubr.f32.gmra.mrb[0].mxu0 %v371
        %v439 = vpop.f32.mrb[0].mxu0
        %v440 = vadd.f32 %v367, %v439
        %v441 = vpop.f32.mrb[0].mxu0
        %442 = vdwg.mxu0
        %vm443 = vcmask 130048
        %444 = vst.msk [vmem:[%s253] sm:$0xff] %vm443, %v440
        %s445 = sand.u32 %s161, 1
        %s446 = scalar_lea.sflag [#allocation4], %s445
        %s447 = sand.u32 %s161, 1
        %s448 = smul.addr %s447, 8
        %s449 = scalar_lea.vmem [#allocation3], %s448
        // Predicated region
        $region45: #{tpu_custom_call.1} parent=39 // pred_check
          %p450 = pneg %p171
        $region46: #{tpu_custom_call.1} parent=39 // pred_check_branch
          %452 = sbr.rel (%p450) target = $region48
        $region47: #{tpu_custom_call.1} parent=39 // pred_region
          %s454 = ssub.s32 128, 128
          %455 = vsyncadd %s446, %s454
          %s456 = sadd.s32 %s24, %s23
          %s457 = smul.addr %s456, 128
          %s458 = scalar_lea.hbm %s5, %s457
          %s460 = sshll.u32 %s449, 4
          %s461 = int_to_ptr.vmem [resolvable:$true] %s460
          %463 = dma.vmem_to_hbm [thread:$0]  %s461, 128, %s458, %s446
        $region48: #{tpu_custom_call.1} parent=39 // pred_fallthru
          _
      $region40: #{tpu_custom_call.1} parent=5 // pred_fallthru
        _
      %p464 = scmp.le.s32.totalorder 2, %s14
      // Predicated region
      $region49: #{tpu_custom_call.1} parent=5 // pred_check
        %p465 = pneg %p464
      $region50: #{tpu_custom_call.1} parent=5 // pred_check_branch
        %467 = sbr.rel (%p465) target = $region52
      $region51: #{tpu_custom_call.1} parent=5 // pred_region
        %s468 = ssub.s32 %s14, 2
        // Predicated region
        $region53: #{tpu_custom_call.1} parent=51 // pred_check
          %p469 = pneg %p177
        $region54: #{tpu_custom_call.1} parent=51 // pred_check_branch
          %471 = sbr.rel (%p469) target = $region56
        $region55: #{tpu_custom_call.1} parent=51 // pred_region
          %s472 = sand.u32 %s162, 1
          %s473 = scalar_lea.sflag [#allocation4], %s472
          %s474 = sand.u32 %s162, 1
          %s475 = smul.addr %s474, 8
          %s476 = scalar_lea.vmem [#allocation3], %s475
          %477 = dma.done %s473, 128
        $region56: #{tpu_custom_call.1} parent=51 // pred_fallthru
          _
      $region52: #{tpu_custom_call.1} parent=5 // pred_fallthru
        _
    $region6: #{tpu_custom_call.1} parent=1 // loop_footer
      %s18 = sadd.s32 1, %s14
    $region7: #{tpu_custom_call.1} parent=1 // loop_footer_branch
      %13 = sbr.rel target = $region3
    $region8: #{tpu_custom_call.1} parent=1 // loop_exit
      _
    %478 = vsyncpa [#allocation4], 1
    %s479 = scalar_lea.sflag [#allocation4], 1
    %480 = vsyncpa %s479, 1

// kernel: tpu_custom_call.1
$region0: #{tpu_custom_call.1}
  #allocation0 [shape = 'u32[]', space=smem, size = 0x4, offset = 0x4, fixed_abs, tag = 'smem constant byte address 0x4 - core index']
  #allocation1 [shape = 'u32[144,128]{1,0:T(1,128)}', space=vmem, size = 0x12000, scoped, tag = 'internal scratch']
  #allocation2 [shape = 'f32[8,32]{1,0:T(8,128)}', space=vmem, size = 0x1000, scoped, tag = 'scratch operand']
  %s0 = inlined_call_operand.vmem [shape: f32[16,32], index: 0, kind: input, shape index: {}]
  %s1 = inlined_call_operand.vmem [shape: f32[32,32], index: 1, kind: input, shape index: {}]
  %s2 = inlined_call_operand.vmem [shape: f32[1,32], index: 2, kind: input, shape index: {}]
  %s3 = inlined_call_operand.vmem [shape: f32[32,16], index: 3, kind: input, shape index: {}]
  %s4 = inlined_call_operand.vmem [shape: f32[1,16], index: 4, kind: input, shape index: {}]
  %s5 = inlined_call_operand.hbm [shape: f32[16,16], index: 5, kind: output, shape index: {}]
  %s6 = sld [smem:[#allocation0]]
  $region57: #{tpu_custom_call.1} parent=0
    _
  %s8 = ssub.s32 1, %s6
  %s9 = scalar_select 0, %s8, %s6
  $region1: #{tpu_custom_call.1} parent=0
    #allocation3 [shape = 'u8[8192]{0}', space=vmem, size = 0x2000, scoped, tag = 'output window, operand 0']
    #allocation4 [shape = 's32[2]{0}', space=sflag, size = 0x8, scoped, tag = 'scoped memory for tpu_custom_call.1']
    %10 = vsyncpa [#allocation4], 0
    %s11 = scalar_lea.sflag [#allocation4], 1
    %12 = vsyncpa %s11, 0
    loop: start=0, step=1, limit=4
    $region2: #{tpu_custom_call.1} parent=1 // loop_pre_header
      _
    $region3: #{tpu_custom_call.1} parent=1 // loop_header
      %s14 = sphi 0, %s18
      %p15 = scmp.ge.s32.totalorder %s14, 4
      %s21 = sphi 0, %s33
      %s22 = sphi 0, %s29
      %s23 = sphi 0, %s21
      %s24 = sphi 0, %s22
      %s25 = sphi 0, %s23
      %s26 = sphi 0, %s24
      %s36 = sphi 0, %s38
      %s39 = sphi 0, %s36
      %s40 = sphi 0, %s39
      %s56 = sphi 0, %s40
      %s60 = sphi 0, %s60
      %s62 = sphi 0, %s60
      %s63 = sphi 0, %s62
      %s77 = sphi 0, %s63
      %s81 = sphi 0, %s81
      %s83 = sphi 0, %s81
      %s84 = sphi 0, %s83
      %s98 = sphi 0, %s84
      %s104 = sphi 0, %s106
      %s107 = sphi 0, %s104
      %s108 = sphi 0, %s107
      %s124 = sphi 0, %s108
      %s130 = sphi 0, %s132
      %s133 = sphi 0, %s130
      %s134 = sphi 0, %s133
      %s150 = sphi 0, %s134
      %s158 = sphi 0, %s160
      %s161 = sphi 0, %s158
      %s162 = sphi 0, %s161
      %s178 = sphi 0, %s162
    $region4: #{tpu_custom_call.1} parent=1 // loop_header_branch
      %17 = sbr.rel (%p15) target = $region8
    $region5: #{tpu_custom_call.1} parent=1 // loop_body
      %s19 = ssub.s32 %s14, 1
      %s20 = ssub.s32 %s14, 2
      %s27 = sadd.s32 1, %s22
      %p28 = scmp.ge.s32.totalorder %s27, 1
      %s29 = scalar_select %p28, 0, %s27
      %s30 = sadd.s32 1, %s21
      %s31 = scalar_select %p28, %s30, %s21
      %p32 = scmp.ge.s32.totalorder %s31, 2
      %s33 = scalar_select %p32, 0, %s31
      %s34 = ssub.s32 %s21, %s33
      %p35 = scmp.eq.s32.totalorder %s34, 0
      %s37 = sadd.s32 %s36, 1
      %s38 = scalar_select %p35, %s36, %s37
      %p41 = pneg %p35
      %p42 = scmp.eq.s32.totalorder %s14, 1
      %p43 = por %p41, %p42
      %p44 = scmp.ne.s32.totalorder %s36, %s39
      %p45 = scmp.eq.s32.totalorder %s14, 0
      %p46 = por %p44, %p45
      %p47 = scmp.ne.s32.totalorder %s36, %s39
      %p48 = scmp.eq.s32.totalorder %s19, 1
      %p49 = por %p47, %p48
      %p50 = scmp.ne.s32.totalorder %s39, %s40
      %p51 = scmp.eq.s32.totalorder %s19, 0
      %p52 = por %p50, %p51
      %p53 = scmp.ne.s32.totalorder %s39, %s40
      %p54 = scmp.eq.s32.totalorder %s20, 1
      %p55 = por %p53, %p54
      %p57 = scmp.ne.s32.totalorder %s40, %s56
      %p58 = scmp.eq.s32.totalorder %s20, 0
      %p59 = por %p57, %p58
      %s61 = sadd.s32 %s60, 1
      %p64 = scmp.eq.s32.totalorder %s14, 1
      %p65 = scmp.ne.s32.totalorder %s60, %s62
      %p66 = scmp.eq.s32.totalorder %s14, 0
      %p67 = por %p65, %p66
      %p68 = scmp.ne.s32.totalorder %s60, %s62
      %p69 = scmp.eq.s32.totalorder %s19, 1
      %p70 = por %p68, %p69
      %p71 = scmp.ne.s32.totalorder %s62, %s63
      %p72 = scmp.eq.s32.totalorder %s19, 0
      %p73 = por %p71, %p72
      %p74 = scmp.ne.s32.totalorder %s62, %s63
      %p75 = scmp.eq.s32.totalorder %s20, 1
      %p76 = por %p74, %p75
      %p78 = scmp.ne.s32.totalorder %s63, %s77
      %p79 = scmp.eq.s32.totalorder %s20, 0
      %p80 = por %p78, %p79
      %s82 = sadd.s32 %s81, 1
      %p85 = scmp.eq.s32.totalorder %s14, 1
      %p86 = scmp.ne.s32.totalorder %s81, %s83
      %p87 = scmp.eq.s32.totalorder %s14, 0
      %p88 = por %p86, %p87
      %p89 = scmp.ne.s32.totalorder %s81, %s83
      %p90 = scmp.eq.s32.totalorder %s19, 1
      %p91 = por %p89, %p90
      %p92 = scmp.ne.s32.totalorder %s83, %s84
      %p93 = scmp.eq.s32.totalorder %s19, 0
      %p94 = por %p92, %p93
      %p95 = scmp.ne.s32.totalorder %s83, %s84
      %p96 = scmp.eq.s32.totalorder %s20, 1
      %p97 = por %p95, %p96
      %p99 = scmp.ne.s32.totalorder %s84, %s98
      %p100 = scmp.eq.s32.totalorder %s20, 0
      %p101 = por %p99, %p100
      %s102 = ssub.s32 %s22, %s29
      %p103 = scmp.eq.s32.totalorder %s102, 0
      %s105 = sadd.s32 %s104, 1
      %s106 = scalar_select %p103, %s104, %s105
      %p109 = pneg %p103
      %p110 = scmp.eq.s32.totalorder %s14, 1
      %p111 = por %p109, %p110
      %p112 = scmp.ne.s32.totalorder %s104, %s107
      %p113 = scmp.eq.s32.totalorder %s14, 0
      %p114 = por %p112, %p113
      %p115 = scmp.ne.s32.totalorder %s104, %s107
      %p116 = scmp.eq.s32.totalorder %s19, 1
      %p117 = por %p115, %p116
      %p118 = scmp.ne.s32.totalorder %s107, %s108
      %p119 = scmp.eq.s32.totalorder %s19, 0
      %p120 = por %p118, %p119
      %p121 = scmp.ne.s32.totalorder %s107, %s108
      %p122 = scmp.eq.s32.totalorder %s20, 1
      %p123 = por %p121, %p122
      %p125 = scmp.ne.s32.totalorder %s108, %s124
      %p126 = scmp.eq.s32.totalorder %s20, 0
      %p127 = por %p125, %p126
      %s128 = ssub.s32 %s22, %s29
      %p129 = scmp.eq.s32.totalorder %s128, 0
      %s131 = sadd.s32 %s130, 1
      %s132 = scalar_select %p129, %s130, %s131
      %p135 = pneg %p129
      %p136 = scmp.eq.s32.totalorder %s14, 1
      %p137 = por %p135, %p136
      %p138 = scmp.ne.s32.totalorder %s130, %s133
      %p139 = scmp.eq.s32.totalorder %s14, 0
      %p140 = por %p138, %p139
      %p141 = scmp.ne.s32.totalorder %s130, %s133
      %p142 = scmp.eq.s32.totalorder %s19, 1
      %p143 = por %p141, %p142
      %p144 = scmp.ne.s32.totalorder %s133, %s134
      %p145 = scmp.eq.s32.totalorder %s19, 0
      %p146 = por %p144, %p145
      %p147 = scmp.ne.s32.totalorder %s133, %s134
      %p148 = scmp.eq.s32.totalorder %s20, 1
      %p149 = por %p147, %p148
      %p151 = scmp.ne.s32.totalorder %s134, %s150
      %p152 = scmp.eq.s32.totalorder %s20, 0
      %p153 = por %p151, %p152
      %s154 = ssub.s32 %s21, %s33
      %s155 = ssub.s32 %s22, %s29
      %s156 = sor.u32 %s154, %s155
      %p157 = scmp.eq.s32.totalorder %s156, 0
      %s159 = sadd.s32 %s158, 1
      %s160 = scalar_select %p157, %s158, %s159
      %p163 = pneg %p157
      %p164 = scmp.eq.s32.totalorder %s14, 1
      %p165 = por %p163, %p164
      %p166 = scmp.ne.s32.totalorder %s158, %s161
      %p167 = scmp.eq.s32.totalorder %s14, 0
      %p168 = por %p166, %p167
      %p169 = scmp.ne.s32.totalorder %s158, %s161
      %p170 = scmp.eq.s32.totalorder %s19, 1
      %p171 = por %p169, %p170
      %p172 = scmp.ne.s32.totalorder %s161, %s162
      %p173 = scmp.eq.s32.totalorder %s19, 0
      %p174 = por %p172, %p173
      %p175 = scmp.ne.s32.totalorder %s161, %s162
      %p176 = scmp.eq.s32.totalorder %s20, 1
      %p177 = por %p175, %p176
      %p179 = scmp.ne.s32.totalorder %s162, %s178
      %p180 = scmp.eq.s32.totalorder %s20, 0
      %p181 = por %p179, %p180
      %p182 = scmp.le.s32.totalorder 1, %s14
      %p183 = scmp.lt.s32.totalorder %s14, 3
      %p184 = pnand %p182, %p183
      %p185 = pneg %p184
      // Predicated region
      $region9: #{tpu_custom_call.1} parent=5 // pred_check
        _
      $region10: #{tpu_custom_call.1} parent=5 // pred_check_branch
        %187 = sbr.rel (%p184) target = $region12
      $region11: #{tpu_custom_call.1} parent=5 // pred_region
        %s188 = ssub.s32 %s14, 1
        // Predicated region
        $region13: #{tpu_custom_call.1} parent=11 // pred_check
          %p189 = pneg %p73
        $region14: #{tpu_custom_call.1} parent=11 // pred_check_branch
          %191 = sbr.rel (%p189) target = $region16
        $region15: #{tpu_custom_call.1} parent=11 // pred_region
          _
        $region16: #{tpu_custom_call.1} parent=11 // pred_fallthru
          _
        // Predicated region
        $region17: #{tpu_custom_call.1} parent=11 // pred_check
          %p192 = pneg %p94
        $region18: #{tpu_custom_call.1} parent=11 // pred_check_branch
          %194 = sbr.rel (%p192) target = $region20
        $region19: #{tpu_custom_call.1} parent=11 // pred_region
          _
        $region20: #{tpu_custom_call.1} parent=11 // pred_fallthru
          _
        // Predicated region
        $region21: #{tpu_custom_call.1} parent=11 // pred_check
          %p195 = pneg %p120
        $region22: #{tpu_custom_call.1} parent=11 // pred_check_branch
          %197 = sbr.rel (%p195) target = $region24
        $region23: #{tpu_custom_call.1} parent=11 // pred_region
          %p198 = scmp.lt.s32.totalorder %s24, 0
          %s199 = scalar_select %p198, %s24, 0
          %s200 = smul.addr %s199, 8
          %s201 = scalar_lea.vmem %s3, %s200
        $region24: #{tpu_custom_call.1} parent=11 // pred_fallthru
          _
        // Predicated region
        $region25: #{tpu_custom_call.1} parent=11 // pred_check
          %p202 = pneg %p146
        $region26: #{tpu_custom_call.1} parent=11 // pred_check_branch
          %204 = sbr.rel (%p202) target = $region28
        $region27: #{tpu_custom_call.1} parent=11 // pred_region
          %p205 = scmp.lt.s32.totalorder %s24, 0
          %s206 = scalar_select %p205, %s24, 0
          %s207 = scalar_lea.vmem %s4, %s206
        $region28: #{tpu_custom_call.1} parent=11 // pred_fallthru
          _
      $region12: #{tpu_custom_call.1} parent=5 // pred_fallthru
        _
      %p208 = scmp.lt.s32.totalorder %s14, 2
      // Predicated region
      $region29: #{tpu_custom_call.1} parent=5 // pred_check
        %p209 = pneg %p208
      $region30: #{tpu_custom_call.1} parent=5 // pred_check_branch
        %211 = sbr.rel (%p209) target = $region32
      $region31: #{tpu_custom_call.1} parent=5 // pred_region
        // Predicated region
        $region33: #{tpu_custom_call.1} parent=31 // pred_check
          %p212 = pneg %p46
        $region34: #{tpu_custom_call.1} parent=31 // pred_check_branch
          %214 = sbr.rel (%p212) target = $region36
        $region35: #{tpu_custom_call.1} parent=31 // pred_region
          %p215 = scmp.lt.s32.totalorder %s21, 1
          %s216 = scalar_select %p215, %s21, 1
          %s217 = smul.addr %s216, 8
          %s218 = scalar_lea.vmem %s0, %s217
        $region36: #{tpu_custom_call.1} parent=31 // pred_fallthru
          _
      $region32: #{tpu_custom_call.1} parent=5 // pred_fallthru
        _
      %p219 = scmp.le.s32.totalorder 1, %s14
      %p220 = scmp.lt.s32.totalorder %s14, 3
      %p221 = pnand %p219, %p220
      %p222 = pneg %p221
      // Predicated region
      $region37: #{tpu_custom_call.1} parent=5 // pred_check
        _
      $region38: #{tpu_custom_call.1} parent=5 // pred_check_branch
        %224 = sbr.rel (%p221) target = $region40
      $region39: #{tpu_custom_call.1} parent=5 // pred_region
        %s225 = ssub.s32 %s14, 1
        %p226 = scmp.lt.s32.totalorder %s23, 1
        %s227 = scalar_select %p226, %s23, 1
        %s228 = smul.addr %s227, 8
        %s229 = scalar_lea.vmem %s0, %s228
        %p230 = pneg %p52
        %p231 = pneg %p49
        %p232 = pneg %p73
        %p233 = pneg %p70
        %p234 = pneg %p94
        %p235 = pneg %p91
        %p236 = scmp.lt.s32.totalorder %s24, 0
        %s237 = scalar_select %p236, %s24, 0
        %s238 = smul.addr %s237, 8
        %s239 = scalar_lea.vmem %s3, %s238
        %p240 = pneg %p120
        %p241 = pneg %p117
        %p242 = scmp.lt.s32.totalorder %s24, 0
        %s243 = scalar_select %p242, %s24, 0
        %s244 = scalar_lea.vmem %s4, %s243
        %p245 = pneg %p146
        %p246 = pneg %p143
        %p247 = pneg %p174
        %p248 = pneg %p171
        %s249 = sand.u32 %s161, 1
        %s250 = scalar_lea.sflag [#allocation4], %s249
        %s251 = sand.u32 %s161, 1
        %s252 = smul.addr %s251, 8
        %s253 = scalar_lea.vmem [#allocation3], %s252
        %p254 = scmp.lt.s32.totalorder %s23, 1
        %s255 = scalar_select %p254, %s23, 1
        %s256 = smul.addr %s255, 8
        %s257 = scalar_lea.vmem %s0, %s256
        %p258 = scmp.lt.s32.totalorder %s24, 0
        %s259 = scalar_select %p258, %s24, 0
        %s260 = smul.addr %s259, 8
        %s261 = scalar_lea.vmem %s3, %s260
        %p262 = scmp.lt.s32.totalorder %s24, 0
        %s263 = scalar_select %p262, %s24, 0
        %s264 = scalar_lea.vmem %s4, %s263
        %p265 = scmp.eq.s32.totalorder %s24, 0
        // Predicated region
        $region41: #{tpu_custom_call.1} parent=39 // pred_check
          %p266 = pneg %p265
        $region42: #{tpu_custom_call.1} parent=39 // pred_check_branch
          %268 = sbr.rel (%p266) target = $region44
        $region43: #{tpu_custom_call.1} parent=39 // pred_region
          %v269 = vld [vmem:[%s257] sm:$0xff]
          %v270 = vld [vmem:[%s1] sm:$0xff]
          %v271 = vld [vmem:[%s1 + $0x8] sm:$0xff]
          %v272 = vld [vmem:[%s1 + $0x10] sm:$0xff]
          %v273 = vld [vmem:[%s1 + $0x18] sm:$0xff]
          %v274 = vld [vmem:[%s2] sm:$0x1]
          %v276 = vlaneseq
          %v277 = vshrl.u32 %v276, 7
          %v278 = vsub.s32 0, %v277
          %v279 = vrot.slane %v274, %v278
          %vm281 = vcmask 261120
          %v283 = vsel %vm281, %v269, 0
          %285 = vmatprep.subr.mxu0 0.0
          %286 = vmatpush1.msra.mxu0 %v270
          %287 = vmatprep.subr.mxu0 0.0
          %288 = vmatpush1.msra.mxu0 %v271
          %289 = vmatprep.subr.mxu0 0.0
          %290 = vmatpush1.msra.mxu0 %v272
          %291 = vmatprep.subr.mxu0 0.0
          %292 = vmatpush1.msra.mxu0 %v273
          %293 = vmatprep.subr.mxu0 0.0
          %294 = vmatpush1.msra.mxu0 0.0
          %295 = vmatprep.subr.mxu0 0.0
          %296 = vmatpush1.msra.mxu0 0.0
          %297 = vmatprep.subr.mxu0 0.0
          %298 = vmatpush1.msra.mxu0 0.0
          %299 = vmatprep.subr.mxu0 0.0
          %300 = vmatpush1.msra.mxu0 0.0
          %301 = vmatprep.subr.mxu0 0.0
          %302 = vmatpush1.msra.mxu0 0.0
          %303 = vmatprep.subr.mxu0 0.0
          %304 = vmatpush1.msra.mxu0 0.0
          %305 = vmatprep.subr.mxu0 0.0
          %306 = vmatpush1.msra.mxu0 0.0
          %307 = vmatprep.subr.mxu0 0.0
          %308 = vmatpush1.msra.mxu0 0.0
          %309 = vmatprep.subr.mxu0 0.0
          %310 = vmatpush1.msra.mxu0 0.0
          %311 = vmatprep.subr.mxu0 0.0
          %312 = vmatpush1.msra.mxu0 0.0
          %313 = vmatprep.subr.mxu0 0.0
          %314 = vmatpush1.msra.mxu0 0.0
          %315 = vmatprep.subr.mxu0 0.0
          %316 = vmatpush1.msra.mxu0 0.0
          %317 = vmatprep.subr.mxu0 0.0
          %318 = vmatpush1.msra.mxu0 0.0
          %319 = vmatprep.subr.mxu0 0.0
          %320 = vmatpush1.msra.mxu0 0.0
          %321 = vmatprep.subr.mxu0 0.0
          %322 = vmatpush1.msra.mxu0 0.0
          %323 = vmatprep.subr.mxu0 0.0
          %324 = vmatpush1.msra.mxu0 0.0
          %325 = vmatprep.subr.mxu0 0.0
          %326 = vmatpush1.msra.mxu0 0.0
          %327 = vmatprep.subr.mxu0 0.0
          %328 = vmatpush1.msra.mxu0 0.0
          %329 = vmatprep.subr.mxu0 0.0
          %330 = vmatpush1.msra.mxu0 0.0
          %331 = vmatprep.subr.mxu0 0.0
          %332 = vmatpush1.msra.mxu0 0.0
          %333 = vmatprep.subr.mxu0 0.0
          %334 = vmatpush1.msra.mxu0 0.0
          %335 = vmatprep.subr.mxu0 0.0
          %336 = vmatpush1.msra.mxu0 0.0
          %337 = vmatprep.subr.mxu0 0.0
          %338 = vmatpush1.msra.mxu0 0.0
          %339 = vmatprep.subr.mxu0 0.0
          %340 = vmatpush1.msra.mxu0 0.0
          %341 = vmatprep.subr.mxu0 0.0
          %342 = vmatpush1.msra.mxu0 0.0
          %343 = vmatprep.subr.mxu0 0.0
          %344 = vmatpush1.msra.mxu0 0.0
          %345 = vmatprep.subr.mxu0 0.0
          %346 = vmatpush1.msra.mxu0 0.0
          %347 = vmatprep.subr.mxu0 0.0
          %348 = vmatpush1.msra.mxu0 0.0
          %349 = vmatprep.mubr.f32.mxu0 0.0
          %350 = vmatmul.mubr.f32.gmra.mrb[0].mxu0 %v283
          %v351 = vpop.f32.mrb[0].mxu0
          %v352 = vadd.f32 %v279, %v351
          %v353 = vpop.f32.mrb[0].mxu0
          %354 = vdwg.mxu0
          %v355 = vmax.f32 %v352, 0.0
          %356 = vst.msk [vmem:[#allocation2] sm:$0xff] %vm281, %v355
        $region44: #{tpu_custom_call.1} parent=39 // pred_fallthru
          _
        %v357 = vld [vmem:[#allocation2] sm:$0xff]
        %v358 = vld [vmem:[%s261] sm:$0xff]
        %v359 = vld [vmem:[%s261 + $0x8] sm:$0xff]
        %v360 = vld [vmem:[%s261 + $0x10] sm:$0xff]
        %v361 = vld [vmem:[%s261 + $0x18] sm:$0xff]
        %v362 = vld [vmem:[%s264] sm:$0x1]
        %v364 = vlaneseq
        %v365 = vshrl.u32 %v364, 7
        %v366 = vsub.s32 0, %v365
        %v367 = vrot.slane %v362, %v366
        %vm369 = vcmask 261120
        %v371 = vsel %vm369, %v357, 0
        %373 = vmatprep.subr.mxu0 0.0
        %374 = vmatpush1.msra.mxu0 %v358
        %375 = vmatprep.subr.mxu0 0.0
        %376 = vmatpush1.msra.mxu0 %v359
        %377 = vmatprep.subr.mxu0 0.0
        %378 = vmatpush1.msra.mxu0 %v360
        %379 = vmatprep.subr.mxu0 0.0
        %380 = vmatpush1.msra.mxu0 %v361
        %381 = vmatprep.subr.mxu0 0.0
        %382 = vmatpush1.msra.mxu0 0.0
        %383 = vmatprep.subr.mxu0 0.0
        %384 = vmatpush1.msra.mxu0 0.0
        %385 = vmatprep.subr.mxu0 0.0
        %386 = vmatpush1.msra.mxu0 0.0
        %387 = vmatprep.subr.mxu0 0.0
        %388 = vmatpush1.msra.mxu0 0.0
        %389 = vmatprep.subr.mxu0 0.0
        %390 = vmatpush1.msra.mxu0 0.0
        %391 = vmatprep.subr.mxu0 0.0
        %392 = vmatpush1.msra.mxu0 0.0
        %393 = vmatprep.subr.mxu0 0.0
        %394 = vmatpush1.msra.mxu0 0.0
        %395 = vmatprep.subr.mxu0 0.0
        %396 = vmatpush1.msra.mxu0 0.0
        %397 = vmatprep.subr.mxu0 0.0
        %398 = vmatpush1.msra.mxu0 0.0
        %399 = vmatprep.subr.mxu0 0.0
        %400 = vmatpush1.msra.mxu0 0.0
        %401 = vmatprep.subr.mxu0 0.0
        %402 = vmatpush1.msra.mxu0 0.0
        %403 = vmatprep.subr.mxu0 0.0
        %404 = vmatpush1.msra.mxu0 0.0
        %405 = vmatprep.subr.mxu0 0.0
        %406 = vmatpush1.msra.mxu0 0.0
        %407 = vmatprep.subr.mxu0 0.0
        %408 = vmatpush1.msra.mxu0 0.0
        %409 = vmatprep.subr.mxu0 0.0
        %410 = vmatpush1.msra.mxu0 0.0
        %411 = vmatprep.subr.mxu0 0.0
        %412 = vmatpush1.msra.mxu0 0.0
        %413 = vmatprep.subr.mxu0 0.0
        %414 = vmatpush1.msra.mxu0 0.0
        %415 = vmatprep.subr.mxu0 0.0
        %416 = vmatpush1.msra.mxu0 0.0
        %417 = vmatprep.subr.mxu0 0.0
        %418 = vmatpush1.msra.mxu0 0.0
        %419 = vmatprep.subr.mxu0 0.0
        %420 = vmatpush1.msra.mxu0 0.0
        %421 = vmatprep.subr.mxu0 0.0
        %422 = vmatpush1.msra.mxu0 0.0
        %423 = vmatprep.subr.mxu0 0.0
        %424 = vmatpush1.msra.mxu0 0.0
        %425 = vmatprep.subr.mxu0 0.0
        %426 = vmatpush1.msra.mxu0 0.0
        %427 = vmatprep.subr.mxu0 0.0
        %428 = vmatpush1.msra.mxu0 0.0
        %429 = vmatprep.subr.mxu0 0.0
        %430 = vmatpush1.msra.mxu0 0.0
        %431 = vmatprep.subr.mxu0 0.0
        %432 = vmatpush1.msra.mxu0 0.0
        %433 = vmatprep.subr.mxu0 0.0
        %434 = vmatpush1.msra.mxu0 0.0
        %435 = vmatprep.subr.mxu0 0.0
        %436 = vmatpush1.msra.mxu0 0.0
        %437 = vmatprep.mubr.f32.mxu0 0.0
        %438 = vmatmul.mubr.f32.gmra.mrb[0].mxu0 %v371
        %v439 = vpop.f32.mrb[0].mxu0
        %v440 = vadd.f32 %v367, %v439
        %v441 = vpop.f32.mrb[0].mxu0
        %442 = vdwg.mxu0
        %vm443 = vcmask 130048
        %444 = vst.msk [vmem:[%s253] sm:$0xff] %vm443, %v440
        %s445 = sand.u32 %s161, 1
        %s446 = scalar_lea.sflag [#allocation4], %s445
        %s447 = sand.u32 %s161, 1
        %s448 = smul.addr %s447, 8
        %s449 = scalar_lea.vmem [#allocation3], %s448
        // Predicated region
        $region45: #{tpu_custom_call.1} parent=39 // pred_check
          %p450 = pneg %p171
        $region46: #{tpu_custom_call.1} parent=39 // pred_check_branch
          %452 = sbr.rel (%p450) target = $region48
        $region47: #{tpu_custom_call.1} parent=39 // pred_region
          %s454 = ssub.s32 128, 128
          %455 = vsyncadd %s446, %s454
          %s456 = sadd.s32 %s24, %s23
          %s457 = smul.addr %s456, 128
          %s458 = scalar_lea.hbm %s5, %s457
          %s460 = sshll.u32 %s449, 4
          %s461 = int_to_ptr.vmem [resolvable:$true] %s460
          %463 = dma.vmem_to_hbm [thread:$0]  %s461, 128, %s458, %s446
        $region48: #{tpu_custom_call.1} parent=39 // pred_fallthru
          _
      $region40: #{tpu_custom_call.1} parent=5 // pred_fallthru
        _
      %p464 = scmp.le.s32.totalorder 2, %s14
      // Predicated region
      $region49: #{tpu_custom_call.1} parent=5 // pred_check
        %p465 = pneg %p464
      $region50: #{tpu_custom_call.1} parent=5 // pred_check_branch
        %467 = sbr.rel (%p465) target = $region52
      $region51: #{tpu_custom_call.1} parent=5 // pred_region
        %s468 = ssub.s32 %s14, 2
        // Predicated region
        $region53: #{tpu_custom_call.1} parent=51 // pred_check
          %p469 = pneg %p177
        $region54: #{tpu_custom_call.1} parent=51 // pred_check_branch
          %471 = sbr.rel (%p469) target = $region56
        $region55: #{tpu_custom_call.1} parent=51 // pred_region
          %s472 = sand.u32 %s162, 1
          %s473 = scalar_lea.sflag [#allocation4], %s472
          %s474 = sand.u32 %s162, 1
          %s475 = smul.addr %s474, 8
          %s476 = scalar_lea.vmem [#allocation3], %s475
          %477 = dma.done %s473, 128
        $region56: #{tpu_custom_call.1} parent=51 // pred_fallthru
          _
      $region52: #{tpu_custom_call.1} parent=5 // pred_fallthru
        _
    $region6: #{tpu_custom_call.1} parent=1 // loop_footer
      %s18 = sadd.s32 1, %s14
    $region7: #{tpu_custom_call.1} parent=1 // loop_footer_branch
      %13 = sbr.rel target = $region3
    $region8: #{tpu_custom_call.1} parent=1 // loop_exit
      _
    %478 = vsyncpa [#allocation4], 1
    %s479 = scalar_lea.sflag [#allocation4], 1
    %480 = vsyncpa %s479, 1

</llo_original>
